<compile_context>
chip_gen: v7x
topology: tpu7x:2x2x1
jax: 0.10.0
libtpu: 0.0.40
codegen_flags: <defaults>
</compile_context>

<pallas_src>
import jax
import jax.numpy as jnp
from jax import lax
from jax.experimental import pallas as pl
from jax.experimental.pallas import tpu as pltpu


def _round_up(x, m):
    return ((x + m - 1) // m) * m


def _make_fc_kernel(norm: bool, use_bias: bool):
    def kernel(*refs):
        if use_bias:
            x_ref, w_ref, b_ref, o_ref, acc_ref, xsq_ref, wsq_ref = refs
        else:
            x_ref, w_ref, o_ref, acc_ref, xsq_ref, wsq_ref = refs
            b_ref = None

        k = pl.program_id(2)
        nk = pl.num_programs(2)

        @pl.when(k == 0)
        def _init():
            acc_ref[...] = jnp.zeros_like(acc_ref)
            if norm:
                xsq_ref[...] = jnp.zeros_like(xsq_ref)
                wsq_ref[...] = jnp.zeros_like(wsq_ref)

        x = x_ref[...]        # (tm, tk)  fed to MXU in input dtype (no upcast copy)
        w = w_ref[...]        # (tn, tk)

        # x @ w.T without materializing a transpose: contract dim 1 of both operands.
        acc_ref[...] += lax.dot_general(
            x, w,
            dimension_numbers=(((1,), (1,)), ((), ())),
            preferred_element_type=jnp.float32,
        )

        if norm:
            # Accumulate sum-of-squares over the full in_dim across K tiles (f32).
            xf = x.astype(jnp.float32)
            wf = w.astype(jnp.float32)
            xsq_ref[...] += jnp.sum(xf * xf, axis=1, keepdims=True)   # (tm, 1)
            wsq_ref[...] += jnp.sum(wf * wf, axis=1, keepdims=True)   # (tn, 1)

        @pl.when(k == nk - 1)
        def _finalize():
            y = acc_ref[...]
            if norm:
                # (x/||x||) @ (w/||w||).T == (x @ w.T) * rsqrt(||x||^2) * rsqrt(||w||^2).T
                # (row/col scaling commutes with the contraction; rsqrt lands on EUP)
                y = y * lax.rsqrt(xsq_ref[...])       # (tm, 1): per-row scale
                y = y * lax.rsqrt(wsq_ref[...]).T     # (1, tn): per-column scale
            if use_bias:
                y = y + b_ref[...].astype(jnp.float32)  # (1, tn), once per output tile
            o_ref[...] = y.astype(o_ref.dtype)

    return kernel


def fc_forward(x, w, b, *, norm: bool,
               tm_max: int = 256, tn_max: int = 256, tk_max: int = 512):
    """Pallas FC forward.

    x: (batch, in_dim), w: (out_dim, in_dim), b: (out_dim,) or None.
    Returns (batch, out_dim) = (normalized) x @ w.T + b.
    """
    M, K = x.shape
    N = w.shape[0]
    use_bias = b is not None

    # Generation-safe tile sizes: fit v5e's 16 MiB default scoped VMEM and
    # v7x's 64 MiB physical VMEM with double-buffering (raise tn/tk on v6e
    # if desired).  tn is a multiple of 128 -> lane-dense (unmasked) stores.
    tm = min(tm_max, _round_up(M, 8))
    tn = min(tn_max, _round_up(N, 128))
    tk = min(tk_max, _round_up(K, 128))

    M_pad, N_pad, K_pad = _round_up(M, tm), _round_up(N, tn), _round_up(K, tk)

    xp = x if (M_pad == M and K_pad == K) else jnp.pad(
        x, ((0, M_pad - M), (0, K_pad - K)))
    wp = w if (N_pad == N and K_pad == K) else jnp.pad(
        w, ((0, N_pad - N), (0, K_pad - K)))

    grid = (M_pad // tm, N_pad // tn, K_pad // tk)

    in_specs = [
        pl.BlockSpec((tm, tk), lambda i, j, k: (i, k)),   # x tile
        pl.BlockSpec((tn, tk), lambda i, j, k: (j, k)),   # w tile
    ]
    args = [xp, wp]
    if use_bias:
        bp = b.reshape(1, N)
        if N_pad != N:
            bp = jnp.pad(bp, ((0, 0), (0, N_pad - N)))
        in_specs.append(pl.BlockSpec((1, tn), lambda i, j, k: (0, j)))
        args.append(bp)
    # (bias operand is dropped entirely when b is None: no zeros DMA stream)

    out = pl.pallas_call(
        _make_fc_kernel(norm, use_bias),
        out_shape=jax.ShapeDtypeStruct((M_pad, N_pad), x.dtype),
        grid_spec=pltpu.PrefetchScalarGridSpec(
            num_scalar_prefetch=0,
            grid=grid,
            in_specs=in_specs,
            out_specs=pl.BlockSpec((tm, tn), lambda i, j, k: (i, j)),
            scratch_shapes=[
                pltpu.VMEM((tm, tn), jnp.float32),   # f32 matmul accumulator
                pltpu.VMEM((tm, 1), jnp.float32),    # sum(x^2) per row over full K
                pltpu.VMEM((tn, 1), jnp.float32),    # sum(w^2) per row over full K
            ],
        ),
        compiler_params=pltpu.CompilerParams(
            dimension_semantics=("parallel", "parallel", "arbitrary")),
    )(*args)

    return out[:M, :N]


class FCPallas:
    """Mirror of the PyTorch FC module with 'gauss0.02' init."""

    def __init__(self, in_dim, out_dim, norm, key, bias=True):
        self.in_dim = in_dim
        self.out_dim = out_dim
        self.norm = norm
        self.use_bias = bias
        kw, kb = jax.random.split(key)
        self.w = 0.02 * jax.random.normal(kw, (out_dim, in_dim), dtype=jnp.float32)
        self.b = (0.02 * jax.random.normal(kb, (out_dim,), dtype=jnp.float32)
                  if bias else None)

    def __call__(self, x):
        return fc_forward(x, self.w, self.b, norm=self.norm)


if __name__ == "__main__":
    key = jax.random.PRNGKey(0)
    k_param, k_x = jax.random.split(key)

    batch, in_dim, out_dim = 8, 32, 64
    model = FCPallas(in_dim, out_dim, norm=True, key=k_param, bias=True)

    x = jax.random.normal(k_x, (batch, in_dim), dtype=jnp.float32)

    y = model(x)
    jax.block_until_ready(y)

    # Pure-JAX reference with the original module's semantics
    # (note: like the PyTorch code, no epsilon is added to the norms).
    x_n = x / jnp.linalg.norm(x, axis=1, keepdims=True)
    w_n = model.w / jnp.linalg.norm(model.w, axis=1, keepdims=True)
    y_ref = x_n @ w_n.T + model.b
    assert y.shape == (batch, out_dim)
    assert jnp.allclose(y, y_ref, atol=1e-5, rtol=1e-5)

    # Also exercise the norm=False / bias=None path once.
    model2 = FCPallas(in_dim, out_dim, norm=False, key=k_param, bias=False)
    y2 = model2(x)
    jax.block_until_ready(y2)
    assert jnp.allclose(y2, x @ model2.w.T, atol=1e-5, rtol=1e-5)

    print("KERNEL_OK")
</pallas_src>

<mosaic_0001>
module attributes {stable_mosaic.version = 11 : i64} {
  func.func @kernel(%arg0: i32, %arg1: i32, %arg2: i32, %arg3: memref<8x128xf32, #tpu.memory_space<vmem>>, %arg4: memref<128x128xf32, #tpu.memory_space<vmem>>, %arg5: memref<1x128xf32, #tpu.memory_space<vmem>>, %arg6: memref<8x128xf32, #tpu.memory_space<vmem>>, %arg7: memref<8x128xf32, #tpu.memory_space<vmem>>, %arg8: memref<8x1xf32, #tpu.memory_space<vmem>>, %arg9: memref<128x1xf32, #tpu.memory_space<vmem>>) attributes {dimension_semantics = [#tpu.dimension_semantics<parallel>, #tpu.dimension_semantics<parallel>, #tpu.dimension_semantics<arbitrary>], iteration_bounds = array<i64: 1, 1, 1>, scalar_prefetch = 0 : i64, scratch_operands = 3 : i64, tpu.core_type = #tpu.core_type<tc>, window_params = [{transform_indices = @transform_0, window_bounds = array<i64: 8, 128>}, {transform_indices = @transform_1, window_bounds = array<i64: 128, 128>}, {transform_indices = @transform_2, window_bounds = array<i64: 1, 128>}, {transform_indices = @transform_3, window_bounds = array<i64: 8, 128>}]} {
    %c0_i32 = arith.constant 0 : i32
    %0 = arith.cmpi eq, %arg2, %c0_i32 : i32
    %1 = arith.extui %0 : i1 to i32
    %c0_i32_0 = arith.constant 0 : i32
    %2 = arith.cmpi ne, %1, %c0_i32_0 : i32
    scf.if %2 {
      %cst_20 = arith.constant 0.000000e+00 : f32
      %24 = vector.broadcast %cst_20 : f32 to vector<8x128xf32>
      %c0_21 = arith.constant 0 : index
      %c0_22 = arith.constant 0 : index
      %25 = vector.load %arg7[%c0_21, %c0_22] : memref<8x128xf32, #tpu.memory_space<vmem>>, vector<8x128xf32>
      tpu.vector_store %arg7[%c0_21, %c0_22], %24 {strides = array<i32>} : memref<8x128xf32, #tpu.memory_space<vmem>>, vector<8x128xf32>,
      %cst_23 = arith.constant 0.000000e+00 : f32
      %26 = vector.broadcast %cst_23 : f32 to vector<8x1xf32>
      %c0_24 = arith.constant 0 : index
      %c0_25 = arith.constant 0 : index
      %27 = vector.load %arg8[%c0_24, %c0_25] : memref<8x1xf32, #tpu.memory_space<vmem>>, vector<8x1xf32>
      tpu.vector_store %arg8[%c0_24, %c0_25], %26 {strides = array<i32>} : memref<8x1xf32, #tpu.memory_space<vmem>>, vector<8x1xf32>,
      %cst_26 = arith.constant 0.000000e+00 : f32
      %28 = vector.broadcast %cst_26 : f32 to vector<128x1xf32>
      %c0_27 = arith.constant 0 : index
      %c0_28 = arith.constant 0 : index
      %29 = vector.load %arg9[%c0_27, %c0_28] : memref<128x1xf32, #tpu.memory_space<vmem>>, vector<128x1xf32>
      tpu.vector_store %arg9[%c0_27, %c0_28], %28 {strides = array<i32>} : memref<128x1xf32, #tpu.memory_space<vmem>>, vector<128x1xf32>,
    } else {
    }
    %c0 = arith.constant 0 : index
    %c0_1 = arith.constant 0 : index
    %3 = vector.load %arg3[%c0, %c0_1] : memref<8x128xf32, #tpu.memory_space<vmem>>, vector<8x128xf32>
    %c0_2 = arith.constant 0 : index
    %c0_3 = arith.constant 0 : index
    %4 = vector.load %arg4[%c0_2, %c0_3] : memref<128x128xf32, #tpu.memory_space<vmem>>, vector<128x128xf32>
    %c0_4 = arith.constant 0 : index
    %c0_5 = arith.constant 0 : index
    %5 = vector.load %arg7[%c0_4, %c0_5] : memref<8x128xf32, #tpu.memory_space<vmem>>, vector<8x128xf32>
    %cst = arith.constant dense<0.000000e+00> : vector<8x128xf32>
    %6 = tpu.matmul %3, %4, %cst {dimension_numbers = #tpu.dot_dimension_numbers<[1], [1], [0], [0], [0, 0, 1, 0], [], []>} : vector<8x128xf32>, vector<128x128xf32>, vector<8x128xf32> -> vector<8x128xf32>
    %7 = arith.addf %5, %6 : vector<8x128xf32>
    %c0_6 = arith.constant 0 : index
    %c0_7 = arith.constant 0 : index
    %8 = vector.load %arg7[%c0_6, %c0_7] : memref<8x128xf32, #tpu.memory_space<vmem>>, vector<8x128xf32>
    tpu.vector_store %arg7[%c0_6, %c0_7], %7 {strides = array<i32>} : memref<8x128xf32, #tpu.memory_space<vmem>>, vector<8x128xf32>,
    %c0_8 = arith.constant 0 : index
    %c0_9 = arith.constant 0 : index
    %9 = vector.load %arg8[%c0_8, %c0_9] : memref<8x1xf32, #tpu.memory_space<vmem>>, vector<8x1xf32>
    %10 = arith.mulf %3, %3 : vector<8x128xf32>
    %cst_10 = arith.constant dense<0.000000e+00> : vector<8xf32>
    %11 = vector.multi_reduction <add>, %10, %cst_10 [1] : vector<8x128xf32> to vector<8xf32>
    %12 = vector.shape_cast %11 : vector<8xf32> to vector<8x1xf32>
    %13 = arith.addf %9, %12 : vector<8x1xf32>
    %c0_11 = arith.constant 0 : index
    %c0_12 = arith.constant 0 : index
    %14 = vector.load %arg8[%c0_11, %c0_12] : memref<8x1xf32, #tpu.memory_space<vmem>>, vector<8x1xf32>
    tpu.vector_store %arg8[%c0_11, %c0_12], %13 {strides = array<i32>} : memref<8x1xf32, #tpu.memory_space<vmem>>, vector<8x1xf32>,
    %c0_13 = arith.constant 0 : index
    %c0_14 = arith.constant 0 : index
    %15 = vector.load %arg9[%c0_13, %c0_14] : memref<128x1xf32, #tpu.memory_space<vmem>>, vector<128x1xf32>
    %16 = arith.mulf %4, %4 : vector<128x128xf32>
    %cst_15 = arith.constant dense<0.000000e+00> : vector<128xf32>
    %17 = vector.multi_reduction <add>, %16, %cst_15 [1] : vector<128x128xf32> to vector<128xf32>
    %18 = vector.shape_cast %17 : vector<128xf32> to vector<128x1xf32>
    %19 = arith.addf %15, %18 : vector<128x1xf32>
    %c0_16 = arith.constant 0 : index
    %c0_17 = arith.constant 0 : index
    %20 = vector.load %arg9[%c0_16, %c0_17] : memref<128x1xf32, #tpu.memory_space<vmem>>, vector<128x1xf32>
    tpu.vector_store %arg9[%c0_16, %c0_17], %19 {strides = array<i32>} : memref<128x1xf32, #tpu.memory_space<vmem>>, vector<128x1xf32>,
    %c0_i32_18 = arith.constant 0 : i32
    %21 = arith.cmpi eq, %arg2, %c0_i32_18 : i32
    %22 = arith.extui %21 : i1 to i32
    %c0_i32_19 = arith.constant 0 : i32
    %23 = arith.cmpi ne, %22, %c0_i32_19 : i32
    scf.if %23 {
      %c0_20 = arith.constant 0 : index
      %c0_21 = arith.constant 0 : index
      %24 = vector.load %arg7[%c0_20, %c0_21] : memref<8x128xf32, #tpu.memory_space<vmem>>, vector<8x128xf32>
      %c0_22 = arith.constant 0 : index
      %c0_23 = arith.constant 0 : index
      %25 = vector.load %arg8[%c0_22, %c0_23] : memref<8x1xf32, #tpu.memory_space<vmem>>, vector<8x1xf32>
      %26 = math.rsqrt %25 : vector<8x1xf32>
      %27 = vector.broadcast %26 : vector<8x1xf32> to vector<8x128xf32>
      %28 = arith.mulf %24, %27 : vector<8x128xf32>
      %c0_24 = arith.constant 0 : index
      %c0_25 = arith.constant 0 : index
      %29 = vector.load %arg9[%c0_24, %c0_25] : memref<128x1xf32, #tpu.memory_space<vmem>>, vector<128x1xf32>
      %30 = math.rsqrt %29 : vector<128x1xf32>
      %31 = tpu.transpose %30, [1, 0] : vector<128x1xf32> -> vector<1x128xf32>
      %32 = vector.broadcast %31 : vector<1x128xf32> to vector<8x128xf32>
      %33 = arith.mulf %28, %32 : vector<8x128xf32>
      %c0_26 = arith.constant 0 : index
      %c0_27 = arith.constant 0 : index
      %34 = vector.load %arg5[%c0_26, %c0_27] : memref<1x128xf32, #tpu.memory_space<vmem>>, vector<1x128xf32>
      %35 = vector.broadcast %34 : vector<1x128xf32> to vector<8x128xf32>
      %36 = arith.addf %33, %35 : vector<8x128xf32>
      %c0_28 = arith.constant 0 : index
      %c0_29 = arith.constant 0 : index
      %37 = vector.load %arg6[%c0_28, %c0_29] : memref<8x128xf32, #tpu.memory_space<vmem>>, vector<8x128xf32>
      tpu.vector_store %arg6[%c0_28, %c0_29], %36 {strides = array<i32>} : memref<8x128xf32, #tpu.memory_space<vmem>>, vector<8x128xf32>,
    } else {
    }
    return
  }
  func.func @transform_0(%arg0: i32, %arg1: i32, %arg2: i32) -> (i32, i32) {
    %c0_i32 = arith.constant 0 : i32
    return %arg0, %arg2 : i32, i32
  }
  func.func @transform_1(%arg0: i32, %arg1: i32, %arg2: i32) -> (i32, i32) {
    %c0_i32 = arith.constant 0 : i32
    return %arg1, %arg2 : i32, i32
  }
  func.func @transform_2(%arg0: i32, %arg1: i32, %arg2: i32) -> (i32, i32) {
    %c0_i32 = arith.constant 0 : i32
    %c0_i32_0 = arith.constant 0 : i32
    return %c0_i32, %arg1 : i32, i32
  }
  func.func @transform_3(%arg0: i32, %arg1: i32, %arg2: i32) -> (i32, i32) {
    %c0_i32 = arith.constant 0 : i32
    return %arg0, %arg1 : i32, i32
  }
}

</mosaic_0001>

<llo_original>
// kernel: tpu_custom_call.1
$region0: #{tpu_custom_call.1}
  #allocation0 [shape = 'u32[]', space=smem, size = 0x4, offset = 0x4, fixed_abs, tag = 'smem constant byte address 0x4 - core index']
  #allocation1 [shape = 'u32[144,128]{1,0:T(1,128)}', space=vmem, size = 0x12000, scoped, tag = 'internal scratch']
  #allocation2 [shape = 'f32[8,128]{1,0:T(8,128)}', space=vmem, size = 0x1000, scoped, tag = 'scratch operand']
  #allocation3 [shape = 'f32[8,1]{1,0:T(8,128)}', space=vmem, size = 0x1000, scoped, tag = 'scratch operand']
  #allocation4 [shape = 'f32[128,1]{1,0:T(8,128)}', space=vmem, size = 0x10000, scoped, tag = 'scratch operand']
  %s0 = inlined_call_operand.hbm [shape: f32[8,128], index: 0, kind: input, shape index: {}]
  %s1 = inlined_call_operand.hbm [shape: f32[128,128], index: 1, kind: input, shape index: {}]
  %s2 = inlined_call_operand.vmem [shape: f32[1,128], index: 2, kind: input, shape index: {}]
  %s3 = inlined_call_operand.hbm [shape: f32[8,128], index: 3, kind: output, shape index: {}]
  %s4 = sld [smem:[#allocation0]]
  $region38: #{tpu_custom_call.1} parent=0
    _
  %s6 = ssub.s32 1, %s4
  %s7 = scalar_select 0, %s6, %s4
  $region1: #{tpu_custom_call.1} parent=0
    #allocation5 [shape = 'u8[4096]{0}', space=vmem, size = 0x1000, scoped, tag = 'input window, operand 0, single buffered']
    #allocation6 [shape = 's32[1]{0}', space=sflag, size = 0x4, scoped, tag = 'scoped memory for tpu_custom_call.1']
    #allocation7 [shape = 's32[1]{0}', space=sflag, size = 0x4, scoped, tag = 'scoped memory for tpu_custom_call.1']
    #allocation8 [shape = 'u8[65536]{0}', space=vmem, size = 0x10000, scoped, tag = 'input window, operand 1, single buffered']
    #allocation9 [shape = 's32[1]{0}', space=sflag, size = 0x4, scoped, tag = 'scoped memory for tpu_custom_call.1']
    #allocation10 [shape = 'u8[4096]{0}', space=vmem, size = 0x1000, scoped, tag = 'output window, operand 0, single buffered']
    %8 = vsyncpa [#allocation6], 0
    %9 = vsyncpa [#allocation9], 0
    %10 = vsyncpa [#allocation7], 0
    // Predicated region
    $region2: #{tpu_custom_call.1} parent=1 // pred_check
      _
    $region3: #{tpu_custom_call.1} parent=1 // pred_check_branch
      %12 = sbr.rel (0) target = $region5
    $region4: #{tpu_custom_call.1} parent=1 // pred_region
      %s14 = ssub.s32 128, 128
      %15 = vsyncadd [#allocation6], %s14
      %s17 = sshll.u32 [#allocation5], 4
      %s18 = int_to_ptr.vmem [resolvable:$true] %s17
      %20 = dma.hbm_to_vmem [thread:$0]  %s0, 128, %s18, [#allocation6]
    $region5: #{tpu_custom_call.1} parent=1 // pred_fallthru
      _
    // Predicated region
    $region6: #{tpu_custom_call.1} parent=1 // pred_check
      _
    $region7: #{tpu_custom_call.1} parent=1 // pred_check_branch
      %22 = sbr.rel (0) target = $region9
    $region8: #{tpu_custom_call.1} parent=1 // pred_region
      %s24 = ssub.s32 2048, 2048
      %25 = vsyncadd [#allocation9], %s24
      %s26 = sshll.u32 [#allocation8], 4
      %s27 = int_to_ptr.vmem [resolvable:$true] %s26
      %32 = dma.hbm_to_vmem [thread:$0]  %s1, 2048, %s27, [#allocation9], 128, 128, 8
    $region9: #{tpu_custom_call.1} parent=1 // pred_fallthru
      _
    // Predicated region
    $region10: #{tpu_custom_call.1} parent=1 // pred_check
      _
    $region11: #{tpu_custom_call.1} parent=1 // pred_check_branch
      %34 = sbr.rel (0) target = $region13
    $region12: #{tpu_custom_call.1} parent=1 // pred_region
      _
    $region13: #{tpu_custom_call.1} parent=1 // pred_fallthru
      _
    // Predicated region
    $region14: #{tpu_custom_call.1} parent=1 // pred_check
      _
    $region15: #{tpu_custom_call.1} parent=1 // pred_check_branch
      %36 = sbr.rel (0) target = $region17
    $region16: #{tpu_custom_call.1} parent=1 // pred_region
      %37 = dma.done [#allocation6], 128
    $region17: #{tpu_custom_call.1} parent=1 // pred_fallthru
      _
    // Predicated region
    $region18: #{tpu_custom_call.1} parent=1 // pred_check
      _
    $region19: #{tpu_custom_call.1} parent=1 // pred_check_branch
      %39 = sbr.rel (0) target = $region21
    $region20: #{tpu_custom_call.1} parent=1 // pred_region
      %40 = dma.done [#allocation9], 2048
    $region21: #{tpu_custom_call.1} parent=1 // pred_fallthru
      _
    %p41 = scmp.eq.s32.totalorder 0, 0
    // Predicated region
    $region22: #{tpu_custom_call.1} parent=1 // pred_check
      %p42 = pneg %p41
    $region23: #{tpu_custom_call.1} parent=1 // pred_check_branch
      %44 = sbr.rel (%p42) target = $region25
    $region24: #{tpu_custom_call.1} parent=1 // pred_region
      %45 = vst [vmem:[#allocation2] sm:$0xff] 0.0
      %vm46 = vcmask 7168
      %47 = vst.msk [vmem:[#allocation3] sm:$0xff] %vm46, 0.0
      %48 = vst.msk [vmem:[#allocation4] sm:$0xff] %vm46, 0.0
      %49 = vst.msk [vmem:[#allocation4 + $0x8] sm:$0xff] %vm46, 0.0
      %50 = vst.msk [vmem:[#allocation4 + $0x10] sm:$0xff] %vm46, 0.0
      %51 = vst.msk [vmem:[#allocation4 + $0x18] sm:$0xff] %vm46, 0.0
      %52 = vst.msk [vmem:[#allocation4 + $0x20] sm:$0xff] %vm46, 0.0
      %53 = vst.msk [vmem:[#allocation4 + $0x28] sm:$0xff] %vm46, 0.0
      %54 = vst.msk [vmem:[#allocation4 + $0x30] sm:$0xff] %vm46, 0.0
      %55 = vst.msk [vmem:[#allocation4 + $0x38] sm:$0xff] %vm46, 0.0
      %56 = vst.msk [vmem:[#allocation4 + $0x40] sm:$0xff] %vm46, 0.0
      %57 = vst.msk [vmem:[#allocation4 + $0x48] sm:$0xff] %vm46, 0.0
      %58 = vst.msk [vmem:[#allocation4 + $0x50] sm:$0xff] %vm46, 0.0
      %59 = vst.msk [vmem:[#allocation4 + $0x58] sm:$0xff] %vm46, 0.0
      %60 = vst.msk [vmem:[#allocation4 + $0x60] sm:$0xff] %vm46, 0.0
      %61 = vst.msk [vmem:[#allocation4 + $0x68] sm:$0xff] %vm46, 0.0
      %62 = vst.msk [vmem:[#allocation4 + $0x70] sm:$0xff] %vm46, 0.0
      %63 = vst.msk [vmem:[#allocation4 + $0x78] sm:$0xff] %vm46, 0.0
    $region25: #{tpu_custom_call.1} parent=1 // pred_fallthru
      _
    %v64 = vld [vmem:[#allocation5] sm:$0xff]
    %v65 = vld [vmem:[#allocation8] sm:$0xff]
    %v66 = vld [vmem:[#allocation8 + $0x8] sm:$0xff]
    %v67 = vld [vmem:[#allocation8 + $0x10] sm:$0xff]
    %v68 = vld [vmem:[#allocation8 + $0x18] sm:$0xff]
    %v69 = vld [vmem:[#allocation8 + $0x20] sm:$0xff]
    %v70 = vld [vmem:[#allocation8 + $0x28] sm:$0xff]
    %v71 = vld [vmem:[#allocation8 + $0x30] sm:$0xff]
    %v72 = vld [vmem:[#allocation8 + $0x38] sm:$0xff]
    %v73 = vld [vmem:[#allocation8 + $0x40] sm:$0xff]
    %v74 = vld [vmem:[#allocation8 + $0x48] sm:$0xff]
    %v75 = vld [vmem:[#allocation8 + $0x50] sm:$0xff]
    %v76 = vld [vmem:[#allocation8 + $0x58] sm:$0xff]
    %v77 = vld [vmem:[#allocation8 + $0x60] sm:$0xff]
    %v78 = vld [vmem:[#allocation8 + $0x68] sm:$0xff]
    %v79 = vld [vmem:[#allocation8 + $0x70] sm:$0xff]
    %v80 = vld [vmem:[#allocation8 + $0x78] sm:$0xff]
    %v81 = vld [vmem:[#allocation2] sm:$0xff]
    %82 = vmatprep.subr.mxu0 0.0
    %83 = vmatpush1.xpose.msra.mxu0 %v65
    %84 = vmatprep.subr.mxu0 0.0
    %85 = vmatpush1.xpose.msra.mxu0 %v66
    %86 = vmatprep.subr.mxu0 0.0
    %87 = vmatpush1.xpose.msra.mxu0 %v67
    %88 = vmatprep.subr.mxu0 0.0
    %89 = vmatpush1.xpose.msra.mxu0 %v68
    %90 = vmatprep.subr.mxu0 0.0
    %91 = vmatpush1.xpose.msra.mxu0 %v69
    %92 = vmatprep.subr.mxu0 0.0
    %93 = vmatpush1.xpose.msra.mxu0 %v70
    %94 = vmatprep.subr.mxu0 0.0
    %95 = vmatpush1.xpose.msra.mxu0 %v71
    %96 = vmatprep.subr.mxu0 0.0
    %97 = vmatpush1.xpose.msra.mxu0 %v72
    %98 = vmatprep.subr.mxu0 0.0
    %99 = vmatpush1.xpose.msra.mxu0 %v73
    %100 = vmatprep.subr.mxu0 0.0
    %101 = vmatpush1.xpose.msra.mxu0 %v74
    %102 = vmatprep.subr.mxu0 0.0
    %103 = vmatpush1.xpose.msra.mxu0 %v75
    %104 = vmatprep.subr.mxu0 0.0
    %105 = vmatpush1.xpose.msra.mxu0 %v76
    %106 = vmatprep.subr.mxu0 0.0
    %107 = vmatpush1.xpose.msra.mxu0 %v77
    %108 = vmatprep.subr.mxu0 0.0
    %109 = vmatpush1.xpose.msra.mxu0 %v78
    %110 = vmatprep.subr.mxu0 0.0
    %111 = vmatpush1.xpose.msra.mxu0 %v79
    %112 = vmatprep.subr.mxu0 0.0
    %113 = vmatpush1.xpose.msra.mxu0 %v80
    %114 = vmatprep.subr.mxu0 0.0
    %115 = vmatpush1.xpose.msra.mxu0 0.0
    %116 = vmatprep.subr.mxu0 0.0
    %117 = vmatpush1.xpose.msra.mxu0 0.0
    %118 = vmatprep.subr.mxu0 0.0
    %119 = vmatpush1.xpose.msra.mxu0 0.0
    %120 = vmatprep.subr.mxu0 0.0
    %121 = vmatpush1.xpose.msra.mxu0 0.0
    %122 = vmatprep.subr.mxu0 0.0
    %123 = vmatpush1.xpose.msra.mxu0 0.0
    %124 = vmatprep.subr.mxu0 0.0
    %125 = vmatpush1.xpose.msra.mxu0 0.0
    %126 = vmatprep.subr.mxu0 0.0
    %127 = vmatpush1.xpose.msra.mxu0 0.0
    %128 = vmatprep.subr.mxu0 0.0
    %129 = vmatpush1.xpose.msra.mxu0 0.0
    %130 = vmatprep.subr.mxu0 0.0
    %131 = vmatpush1.xpose.msra.mxu0 0.0
    %132 = vmatprep.subr.mxu0 0.0
    %133 = vmatpush1.xpose.msra.mxu0 0.0
    %134 = vmatprep.subr.mxu0 0.0
    %135 = vmatpush1.xpose.msra.mxu0 0.0
    %136 = vmatprep.subr.mxu0 0.0
    %137 = vmatpush1.xpose.msra.mxu0 0.0
    %138 = vmatprep.subr.mxu0 0.0
    %139 = vmatpush1.xpose.msra.mxu0 0.0
    %140 = vmatprep.subr.mxu0 0.0
    %141 = vmatpush1.xpose.msra.mxu0 0.0
    %142 = vmatprep.subr.mxu0 0.0
    %143 = vmatpush1.xpose.msra.mxu0 0.0
    %144 = vmatprep.subr.mxu0 0.0
    %145 = vmatpush1.xpose.msra.mxu0 0.0
    %146 = vmatprep.mubr.f32.mxu0 0.0
    %147 = vmatmul.mubr.f32.gmra.mrb[0].mxu0 %v64
    %v148 = vpop.f32.mrb[0].mxu0
    %v149 = vadd.f32 0.0, %v148
    %v150 = vpop.f32.mrb[0].mxu0
    %151 = vdwg.mxu0
    %v152 = vadd.f32 %v81, %v149
    %153 = vst [vmem:[#allocation2] sm:$0xff] %v152
    %v154 = vld [vmem:[#allocation3] sm:$0xff]
    %v155 = vmul.f32 %v64, %v64
    %156 = vadd.xlane.f32.xlu0 %v155
    %v157 = vpop.xlane.xlu0 %156
    %v158 = vadd.f32 %v154, %v157
    %vm159 = vcmask 7168
    %160 = vst.msk [vmem:[#allocation3] sm:$0xff] %vm159, %v158
    %v161 = vld [vmem:[#allocation4] sm:$0xff]
    %v162 = vld [vmem:[#allocation4 + $0x8] sm:$0xff]
    %v163 = vld [vmem:[#allocation4 + $0x10] sm:$0xff]
    %v164 = vld [vmem:[#allocation4 + $0x18] sm:$0xff]
    %v165 = vld [vmem:[#allocation4 + $0x20] sm:$0xff]
    %v166 = vld [vmem:[#allocation4 + $0x28] sm:$0xff]
    %v167 = vld [vmem:[#allocation4 + $0x30] sm:$0xff]
    %v168 = vld [vmem:[#allocation4 + $0x38] sm:$0xff]
    %v169 = vld [vmem:[#allocation4 + $0x40] sm:$0xff]
    %v170 = vld [vmem:[#allocation4 + $0x48] sm:$0xff]
    %v171 = vld [vmem:[#allocation4 + $0x50] sm:$0xff]
    %v172 = vld [vmem:[#allocation4 + $0x58] sm:$0xff]
    %v173 = vld [vmem:[#allocation4 + $0x60] sm:$0xff]
    %v174 = vld [vmem:[#allocation4 + $0x68] sm:$0xff]
    %v175 = vld [vmem:[#allocation4 + $0x70] sm:$0xff]
    %v176 = vld [vmem:[#allocation4 + $0x78] sm:$0xff]
    %v177 = vmul.f32 %v65, %v65
    %v178 = vmul.f32 %v66, %v66
    %v179 = vmul.f32 %v67, %v67
    %v180 = vmul.f32 %v68, %v68
    %v181 = vmul.f32 %v69, %v69
    %v182 = vmul.f32 %v70, %v70
    %v183 = vmul.f32 %v71, %v71
    %v184 = vmul.f32 %v72, %v72
    %v185 = vmul.f32 %v73, %v73
    %v186 = vmul.f32 %v74, %v74
    %v187 = vmul.f32 %v75, %v75
    %v188 = vmul.f32 %v76, %v76
    %v189 = vmul.f32 %v77, %v77
    %v190 = vmul.f32 %v78, %v78
    %v191 = vmul.f32 %v79, %v79
    %v192 = vmul.f32 %v80, %v80
    %193 = vadd.xlane.f32.xlu0 %v177
    %v194 = vpop.xlane.xlu0 %193
    %195 = vadd.xlane.f32.xlu0 %v178
    %v196 = vpop.xlane.xlu0 %195
    %197 = vadd.xlane.f32.xlu0 %v179
    %v198 = vpop.xlane.xlu0 %197
    %199 = vadd.xlane.f32.xlu0 %v180
    %v200 = vpop.xlane.xlu0 %199
    %201 = vadd.xlane.f32.xlu0 %v181
    %v202 = vpop.xlane.xlu0 %201
    %203 = vadd.xlane.f32.xlu0 %v182
    %v204 = vpop.xlane.xlu0 %203
    %205 = vadd.xlane.f32.xlu0 %v183
    %v206 = vpop.xlane.xlu0 %205
    %207 = vadd.xlane.f32.xlu0 %v184
    %v208 = vpop.xlane.xlu0 %207
    %209 = vadd.xlane.f32.xlu0 %v185
    %v210 = vpop.xlane.xlu0 %209
    %211 = vadd.xlane.f32.xlu0 %v186
    %v212 = vpop.xlane.xlu0 %211
    %213 = vadd.xlane.f32.xlu0 %v187
    %v214 = vpop.xlane.xlu0 %213
    %215 = vadd.xlane.f32.xlu0 %v188
    %v216 = vpop.xlane.xlu0 %215
    %217 = vadd.xlane.f32.xlu0 %v189
    %v218 = vpop.xlane.xlu0 %217
    %219 = vadd.xlane.f32.xlu0 %v190
    %v220 = vpop.xlane.xlu0 %219
    %221 = vadd.xlane.f32.xlu0 %v191
    %v222 = vpop.xlane.xlu0 %221
    %223 = vadd.xlane.f32.xlu0 %v192
    %v224 = vpop.xlane.xlu0 %223
    %v225 = vadd.f32 %v161, %v194
    %v226 = vadd.f32 %v162, %v196
    %v227 = vadd.f32 %v163, %v198
    %v228 = vadd.f32 %v164, %v200
    %v229 = vadd.f32 %v165, %v202
    %v230 = vadd.f32 %v166, %v204
    %v231 = vadd.f32 %v167, %v206
    %v232 = vadd.f32 %v168, %v208
    %v233 = vadd.f32 %v169, %v210
    %v234 = vadd.f32 %v170, %v212
    %v235 = vadd.f32 %v171, %v214
    %v236 = vadd.f32 %v172, %v216
    %v237 = vadd.f32 %v173, %v218
    %v238 = vadd.f32 %v174, %v220
    %v239 = vadd.f32 %v175, %v222
    %v240 = vadd.f32 %v176, %v224
    %241 = vst.msk [vmem:[#allocation4] sm:$0xff] %vm159, %v225
    %242 = vst.msk [vmem:[#allocation4 + $0x8] sm:$0xff] %vm159, %v226
    %243 = vst.msk [vmem:[#allocation4 + $0x10] sm:$0xff] %vm159, %v227
    %244 = vst.msk [vmem:[#allocation4 + $0x18] sm:$0xff] %vm159, %v228
    %245 = vst.msk [vmem:[#allocation4 + $0x20] sm:$0xff] %vm159, %v229
    %246 = vst.msk [vmem:[#allocation4 + $0x28] sm:$0xff] %vm159, %v230
    %247 = vst.msk [vmem:[#allocation4 + $0x30] sm:$0xff] %vm159, %v231
    %248 = vst.msk [vmem:[#allocation4 + $0x38] sm:$0xff] %vm159, %v232
    %249 = vst.msk [vmem:[#allocation4 + $0x40] sm:$0xff] %vm159, %v233
    %250 = vst.msk [vmem:[#allocation4 + $0x48] sm:$0xff] %vm159, %v234
    %251 = vst.msk [vmem:[#allocation4 + $0x50] sm:$0xff] %vm159, %v235
    %252 = vst.msk [vmem:[#allocation4 + $0x58] sm:$0xff] %vm159, %v236
    %253 = vst.msk [vmem:[#allocation4 + $0x60] sm:$0xff] %vm159, %v237
    %254 = vst.msk [vmem:[#allocation4 + $0x68] sm:$0xff] %vm159, %v238
    %255 = vst.msk [vmem:[#allocation4 + $0x70] sm:$0xff] %vm159, %v239
    %256 = vst.msk [vmem:[#allocation4 + $0x78] sm:$0xff] %vm159, %v240
    // Predicated region
    $region26: #{tpu_custom_call.1} parent=1 // pred_check
      %p257 = pneg %p41
    $region27: #{tpu_custom_call.1} parent=1 // pred_check_branch
      %259 = sbr.rel (%p257) target = $region29
    $region28: #{tpu_custom_call.1} parent=1 // pred_region
      %v260 = vld [vmem:[#allocation2] sm:$0xff]
      %v261 = vld [vmem:[#allocation3] sm:$0xff]
      %v262 = vrsqrt.pop %v261
      %264 = vset.pattern.permute.xlu0 0
      %265 = vperm.xlu0 %264, %v262
      %v266 = vpop.permute.xlu0 %265
      %v268 = vmul.f32 %v260, %v266
      %v269 = vld [vmem:[#allocation4] sm:$0xff]
      %v270 = vld [vmem:[#allocation4 + $0x8] sm:$0xff]
      %v271 = vld [vmem:[#allocation4 + $0x10] sm:$0xff]
      %v272 = vld [vmem:[#allocation4 + $0x18] sm:$0xff]
      %v273 = vld [vmem:[#allocation4 + $0x20] sm:$0xff]
      %v274 = vld [vmem:[#allocation4 + $0x28] sm:$0xff]
      %v275 = vld [vmem:[#allocation4 + $0x30] sm:$0xff]
      %v276 = vld [vmem:[#allocation4 + $0x38] sm:$0xff]
      %v277 = vld [vmem:[#allocation4 + $0x40] sm:$0xff]
      %v278 = vld [vmem:[#allocation4 + $0x48] sm:$0xff]
      %v279 = vld [vmem:[#allocation4 + $0x50] sm:$0xff]
      %v280 = vld [vmem:[#allocation4 + $0x58] sm:$0xff]
      %v281 = vld [vmem:[#allocation4 + $0x60] sm:$0xff]
      %v282 = vld [vmem:[#allocation4 + $0x68] sm:$0xff]
      %v283 = vld [vmem:[#allocation4 + $0x70] sm:$0xff]
      %v284 = vld [vmem:[#allocation4 + $0x78] sm:$0xff]
      %v285 = vrsqrt.pop %v269
      %v286 = vrsqrt.pop %v270
      %v287 = vrsqrt.pop %v271
      %v288 = vrsqrt.pop %v272
      %v289 = vrsqrt.pop %v273
      %v290 = vrsqrt.pop %v274
      %v291 = vrsqrt.pop %v275
      %v292 = vrsqrt.pop %v276
      %v293 = vrsqrt.pop %v277
      %v294 = vrsqrt.pop %v278
      %v295 = vrsqrt.pop %v279
      %v296 = vrsqrt.pop %v280
      %v297 = vrsqrt.pop %v281
      %v298 = vrsqrt.pop %v282
      %v299 = vrsqrt.pop %v283
      %v300 = vrsqrt.pop %v284
      %301 = vxpose.xlu0.b32.start [1/16] %v285, 128
      %302 = vxpose.xlu0.b32.cont [2/16] %v286, 128
      %303 = vxpose.xlu0.b32.cont [3/16] %v287, 128
      %304 = vxpose.xlu0.b32.cont [4/16] %v288, 128
      %305 = vxpose.xlu0.b32.cont [5/16] %v289, 128
      %306 = vxpose.xlu0.b32.cont [6/16] %v290, 128
      %307 = vxpose.xlu0.b32.cont [7/16] %v291, 128
      %308 = vxpose.xlu0.b32.cont [8/16] %v292, 128
      %309 = vxpose.xlu0.b32.cont [9/16] %v293, 128
      %310 = vxpose.xlu0.b32.cont [10/16] %v294, 128
      %311 = vxpose.xlu0.b32.cont [11/16] %v295, 128
      %312 = vxpose.xlu0.b32.cont [12/16] %v296, 128
      %313 = vxpose.xlu0.b32.cont [13/16] %v297, 128
      %314 = vxpose.xlu0.b32.cont [14/16] %v298, 128
      %315 = vxpose.xlu0.b32.cont [15/16] %v299, 128
      %316 = vxpose.xlu0.b32.end [16/16] %v300, 128
      %v317 = vpop.trf.xlu0
      %v318 = vpop.trf.xlu0
      %v319 = vpop.trf.xlu0
      %v320 = vpop.trf.xlu0
      %v321 = vpop.trf.xlu0
      %v322 = vpop.trf.xlu0
      %v323 = vpop.trf.xlu0
      %v324 = vpop.trf.xlu0
      %v325 = vpop.trf.xlu0
      %v326 = vpop.trf.xlu0
      %v327 = vpop.trf.xlu0
      %v328 = vpop.trf.xlu0
      %v329 = vpop.trf.xlu0
      %v330 = vpop.trf.xlu0
      %v331 = vpop.trf.xlu0
      %v332 = vpop.trf.xlu0
      %v333 = vlaneseq
      %v334 = vshrl.u32 %v333, 7
      %v335 = vsub.s32 0, %v334
      %v336 = vrot.slane %v317, %v335
      %v337 = vmul.f32 %v268, %v336
      %v338 = vld [vmem:[%s2] sm:$0x1]
      %v340 = vlaneseq
      %v341 = vshrl.u32 %v340, 7
      %v342 = vsub.s32 0, %v341
      %v343 = vrot.slane %v338, %v342
      %v345 = vadd.f32 %v337, %v343
      %346 = vst [vmem:[#allocation10] sm:$0xff] %v345
    $region29: #{tpu_custom_call.1} parent=1 // pred_fallthru
      _
    // Predicated region
    $region30: #{tpu_custom_call.1} parent=1 // pred_check
      _
    $region31: #{tpu_custom_call.1} parent=1 // pred_check_branch
      %348 = sbr.rel (0) target = $region33
    $region32: #{tpu_custom_call.1} parent=1 // pred_region
      %s350 = ssub.s32 128, 128
      %351 = vsyncadd [#allocation7], %s350
      %s353 = sshll.u32 [#allocation10], 4
      %s354 = int_to_ptr.vmem [resolvable:$true] %s353
      %356 = dma.vmem_to_hbm [thread:$0]  %s354, 128, %s3, [#allocation7]
    $region33: #{tpu_custom_call.1} parent=1 // pred_fallthru
      _
    // Predicated region
    $region34: #{tpu_custom_call.1} parent=1 // pred_check
      _
    $region35: #{tpu_custom_call.1} parent=1 // pred_check_branch
      %358 = sbr.rel (0) target = $region37
    $region36: #{tpu_custom_call.1} parent=1 // pred_region
      %359 = dma.done [#allocation7], 128
    $region37: #{tpu_custom_call.1} parent=1 // pred_fallthru
      _
    %360 = vsyncpa [#allocation6], 1
    %361 = vsyncpa [#allocation9], 1
    %362 = vsyncpa [#allocation7], 1

</llo_original>
